<compile_context>
chip_gen: v7x
topology: tpu7x:2x2x1
jax: 0.10.0
libtpu: 0.0.40
codegen_flags: <defaults>
</compile_context>

<pallas_src>
import jax
import jax.numpy as jnp
from jax.experimental import pallas as pl
from jax.experimental.pallas import tpu as pltpu

_LANE = 128


def _round_up(v, m):
    return (v + m - 1) // m * m


def _tpu_vmem_and_cores():
    """Generation-aware (vmem_limit_bytes, tile budget, TensorCores/chip)."""
    phys = 64 * 1024 * 1024          # conservative default (v7x physical VMEM)
    cores = 1
    try:
        info = pltpu.get_tpu_info()
        v = getattr(info, "vmem_capacity_bytes", None)
        if v:
            phys = int(v)
        for name in ("num_cores", "core_count", "num_tensorcores",
                     "tensorcore_count", "cores_per_chip"):
            c = getattr(info, name, None)
            if c:
                cores = int(c)
                break
    except Exception:
        pass
    # ~96 MiB scoped limit on 128 MiB parts (v5e/v6e), ~48 MiB on 64 MiB v7x.
    limit = min(phys * 3 // 4, 100 * 1024 * 1024)
    budget = max(limit - 8 * 1024 * 1024, 16 * 1024 * 1024)
    return limit, budget, cores


def _plan(B, M, Kp, budget, cores, *, single_buffer_weights=True,
          force_k_tiling=False):
    """Pick ("resident", tile_b, None) or ("ktiled", tile_b, tile_k)."""
    bf16, f32 = 2, 4
    wmul = 1 if single_buffer_weights else 2
    weight_bytes = wmul * (2 * M * Kp * bf16) + 2 * (Kp + M) * f32

    def resident_step(tb):
        io = 2 * tb * M * f32 + 2 * tb * M * f32            # x, out (2 bufs each)
        interm = tb * M * bf16                              # bf16 cast of x
        interm += tb * Kp * (f32 + bf16)                    # f32 hidden + bf16 copy
        interm += tb * M * f32                              # f32 result before store
        return io + interm

    def ktiled_step(tb, tk):
        io = 2 * tb * M * f32 + 2 * tb * M * f32
        w_io = 2 * (2 * M * tk * bf16) + 2 * tk * f32 + 2 * M * f32
        interm = tb * M * f32                               # f32 accumulator scratch
        interm += tb * M * bf16 + tb * tk * (f32 + bf16) + tb * M * f32
        return io + w_io + interm

    if not force_k_tiling:
        tile_b = min(1024, max(_LANE, _round_up(B, _LANE)))
        while tile_b > _LANE and weight_bytes + resident_step(tile_b) > budget:
            tile_b //= 2
        if weight_bytes + resident_step(tile_b) <= budget:
            if cores >= 2:
                # Prefer a grid-step count that splits evenly across the
                # TensorCores (avoids load imbalance on 2-TC v7x). On 1-TC
                # chips (v5e/v6e) the grid is a serial loop: don't shrink.
                while tile_b > _LANE and pl.cdiv(B, tile_b) % cores != 0:
                    tile_b //= 2
            return "resident", tile_b, None
        # Weights don't fit VMEM (large M*K, esp. on v7x): stream them (below).

    if force_k_tiling:
        return "ktiled", _LANE, min(Kp, _LANE)

    tk = min(Kp, 512)
    while tk > _LANE and (Kp % tk != 0 or ktiled_step(_LANE, tk) > budget):
        tk //= 2
    tb = _LANE
    # Bigger batch tiles cut total weight re-streaming (weights are re-read
    # once per batch tile in the streamed scheme).
    while (tb < 1024 and tb < _round_up(B, _LANE)
           and ktiled_step(2 * tb, tk) <= budget):
        tb *= 2
    # TODO(synk): if even (tb=128, tk=128) exceeds the budget (extreme M), an
    # additional output-dim tiling level would be needed; not implemented.
    return "ktiled", tb, tk


# ----------------------------- kernels --------------------------------------


def _resident_kernel(x_ref, w1_ref, b1_ref, w2_ref, b2_ref, o_ref):
    # x: (TB, M) f32 | w1: (M, Kp) bf16 | b1: (1, Kp) f32
    # w2: (Kp, M) bf16 | b2: (1, M) f32 | o: (TB, M)
    xb = x_ref[...].astype(jnp.bfloat16)                  # cast fused in-kernel
    h = jnp.dot(xb, w1_ref[...], preferred_element_type=jnp.float32)
    h = jnp.maximum(h + b1_ref[...], 0.0)                 # bias + ReLU in f32
    # Dropout(p=0.2) is identity at inference time.
    # TODO(synk): training-mode dropout would need pltpu.prng_seed +
    # pltpu.stateful_bernoulli and cannot bit-match torch's RNG stream.
    y = jnp.dot(h.astype(jnp.bfloat16), w2_ref[...],
                preferred_element_type=jnp.float32)
    o_ref[...] = jnp.maximum(y + b2_ref[...], 0.0).astype(o_ref.dtype)


def _ktiled_kernel(x_ref, w1_ref, b1_ref, w2_ref, b2_ref, o_ref, acc_ref):
    # Grid = (batch tiles, Kp // tk). Weights are streamed tk hidden units at
    # a time; the (TB, M) f32 accumulator lives in VMEM scratch.
    k = pl.program_id(1)

    @pl.when(k == 0)
    def _():
        acc_ref[...] = jnp.zeros_like(acc_ref)

    xb = x_ref[...].astype(jnp.bfloat16)
    h = jnp.dot(xb, w1_ref[...], preferred_element_type=jnp.float32)
    h = jnp.maximum(h + b1_ref[...], 0.0)
    acc_ref[...] += jnp.dot(h.astype(jnp.bfloat16), w2_ref[...],
                            preferred_element_type=jnp.float32)

    @pl.when(k == pl.num_programs(1) - 1)
    def _():
        o_ref[...] = jnp.maximum(acc_ref[...] + b2_ref[...],
                                 0.0).astype(o_ref.dtype)


# --------------------------- pallas_call builders ----------------------------


def _resident_call(B, M, Kp, tile_b, out_dtype, vmem_limit, single_buffer):
    # Constant-index weight/bias blocks are fetched once; single-buffering
    # them halves their VMEM footprint (matters most under v7x's 64 MiB).
    wkw = {"pipeline_mode": pl.Buffered(1)} if single_buffer else {}
    out_bytes = jnp.dtype(out_dtype).itemsize
    return pl.pallas_call(
        _resident_kernel,
        out_shape=jax.ShapeDtypeStruct((B, M), out_dtype),
        grid_spec=pltpu.PrefetchScalarGridSpec(
            num_scalar_prefetch=0,
            grid=(pl.cdiv(B, tile_b),),
            in_specs=[
                pl.BlockSpec((tile_b, M), lambda i: (i, 0)),      # x (batch-tiled)
                pl.BlockSpec((M, Kp), lambda i: (0, 0), **wkw),   # w1 (resident)
                pl.BlockSpec((1, Kp), lambda i: (0, 0), **wkw),   # b1
                pl.BlockSpec((Kp, M), lambda i: (0, 0), **wkw),   # w2 (resident)
                pl.BlockSpec((1, M), lambda i: (0, 0), **wkw),    # b2
            ],
            out_specs=pl.BlockSpec((tile_b, M), lambda i: (i, 0)),
        ),
        compiler_params=pltpu.CompilerParams(
            dimension_semantics=("parallel",),
            vmem_limit_bytes=vmem_limit,
        ),
        cost_estimate=pl.CostEstimate(
            flops=4 * B * M * Kp,
            transcendentals=0,
            bytes_accessed=(B * M * 4 + 2 * M * Kp * 2 + (Kp + M) * 4
                            + B * M * out_bytes),
        ),
    )


def _ktiled_call(B, M, Kp, tb, tk, out_dtype, vmem_limit):
    nbt = pl.cdiv(B, tb)
    out_bytes = jnp.dtype(out_dtype).itemsize
    return pl.pallas_call(
        _ktiled_kernel,
        out_shape=jax.ShapeDtypeStruct((B, M), out_dtype),
        grid_spec=pltpu.PrefetchScalarGridSpec(
            num_scalar_prefetch=0,
            grid=(nbt, Kp // tk),
            in_specs=[
                pl.BlockSpec((tb, M), lambda i, k: (i, 0)),   # x (reused over k)
                pl.BlockSpec((M, tk), lambda i, k: (0, k)),   # w1 column block
                pl.BlockSpec((1, tk), lambda i, k: (0, k)),   # b1 slice
                pl.BlockSpec((tk, M), lambda i, k: (k, 0)),   # w2 row block
                pl.BlockSpec((1, M), lambda i, k: (0, 0)),    # b2
            ],
            out_specs=pl.BlockSpec((tb, M), lambda i, k: (i, 0)),
            scratch_shapes=[pltpu.VMEM((tb, M), jnp.float32)],
        ),
        compiler_params=pltpu.CompilerParams(
            dimension_semantics=("parallel", "arbitrary"),
            vmem_limit_bytes=vmem_limit,
        ),
        cost_estimate=pl.CostEstimate(
            flops=4 * B * M * Kp,
            transcendentals=0,
            bytes_accessed=(B * M * 4 + nbt * (2 * M * Kp * 2 + (Kp + M) * 4)
                            + B * M * out_bytes),
        ),
    )


# ------------------------------ public API -----------------------------------


def prepare_params(w1, b1, w2, b2):
    """One-time weight prep (call once, outside the forward loop): cast the
    weights to bf16 and zero-pad the hidden dim K to a multiple of 128.
    Zero padding is exact: padded hidden lanes are ReLU(0 + 0) = 0 and hit
    zero rows of w2, contributing nothing to the output."""
    M, K = w1.shape
    Kp = _round_up(K, _LANE)
    w1p = jnp.pad(w1.astype(jnp.bfloat16), ((0, 0), (0, Kp - K)))
    b1p = jnp.pad(b1.astype(jnp.float32).reshape(1, K), ((0, 0), (0, Kp - K)))
    w2p = jnp.pad(w2.astype(jnp.bfloat16), ((0, Kp - K), (0, 0)))
    b2p = b2.astype(jnp.float32).reshape(1, M)
    return w1p, b1p, w2p, b2p


def autoencoder_forward(x, params, *, out_dtype=jnp.float32,
                        force_k_tiling=False):
    """AutoEncoder forward: relu(relu(x @ w1 + b1) @ w2 + b2).

    x: [B, M] float32, consumed as-is (bf16 MXU cast fused in-kernel, f32
    accumulation). out_dtype=jnp.bfloat16 halves the output HBM stream when
    the caller's numerical contract allows; float32 matches the torch module.
    """
    w1p, b1p, w2p, b2p = params
    B, M = x.shape
    assert w1p.shape[0] == M and w2p.shape[1] == M, "param/input shape mismatch"
    Kp = w1p.shape[1]

    vmem_limit, budget, cores = _tpu_vmem_and_cores()
    mode, tb, tk = _plan(B, M, Kp, budget, cores, force_k_tiling=force_k_tiling)

    if mode == "resident":
        try:
            return _resident_call(B, M, Kp, tb, out_dtype, vmem_limit, True)(
                x, w1p, b1p, w2p, b2p)
        except Exception:
            # pl.Buffered(1) (single-buffered resident weights) not supported
            # on this jax version: re-plan assuming double-buffered weights.
            mode, tb, tk = _plan(B, M, Kp, budget, cores,
                                 single_buffer_weights=False,
                                 force_k_tiling=force_k_tiling)
            if mode == "resident":
                return _resident_call(B, M, Kp, tb, out_dtype, vmem_limit,
                                      False)(x, w1p, b1p, w2p, b2p)

    return _ktiled_call(B, M, Kp, tb, tk, out_dtype, vmem_limit)(
        x, w1p, b1p, w2p, b2p)


def init_params(key, M, K):
    """Deterministic init mimicking torch.nn.Linear's U(-1/sqrt(in), 1/sqrt(in))."""
    k1, k2, k3, k4 = jax.random.split(key, 4)
    bound1 = 1.0 / jnp.sqrt(jnp.float32(M))
    bound2 = 1.0 / jnp.sqrt(jnp.float32(K))
    # Stored transposed relative to torch ([in, out] instead of [out, in]).
    w1 = jax.random.uniform(k1, (M, K), jnp.float32, -bound1, bound1)
    b1 = jax.random.uniform(k2, (1, K), jnp.float32, -bound1, bound1)
    w2 = jax.random.uniform(k3, (K, M), jnp.float32, -bound2, bound2)
    b2 = jax.random.uniform(k4, (1, M), jnp.float32, -bound2, bound2)
    return w1, b1, w2, b2


def reference_forward(x, w1, b1, w2, b2):
    h = jnp.maximum(x @ w1 + b1, 0.0)
    return jnp.maximum(h @ w2 + b2, 0.0)


if __name__ == "__main__":
    key = jax.random.PRNGKey(0)
    kx, kp, kx2, kp2 = jax.random.split(key, 4)

    # --- small demo shapes: weight-resident path ---
    B, M, K = 16, 32, 64
    x = jax.random.normal(kx, (B, M), jnp.float32)
    w1, b1, w2, b2 = init_params(kp, M, K)
    params = prepare_params(w1, b1, w2, b2)

    out = jax.block_until_ready(autoencoder_forward(x, params))
    ref = reference_forward(x, w1, b1, w2, b2)
    assert out.shape == (B, M) and out.dtype == jnp.float32
    # bf16 matmul inputs with f32 accumulation -> loosened tolerance vs f32 ref
    assert jnp.allclose(out, ref, atol=3e-2, rtol=3e-2), "resident path mismatch"

    # --- exercise the contraction-tiled (K-streamed) fallback path ---
    B2, M2, K2 = 200, 256, 384           # partial batch block + 3 K steps
    x2 = jax.random.normal(kx2, (B2, M2), jnp.float32)
    raw2 = init_params(kp2, M2, K2)
    params2 = prepare_params(*raw2)
    out2 = jax.block_until_ready(
        autoencoder_forward(x2, params2, force_k_tiling=True))
    ref2 = reference_forward(x2, *raw2)
    assert out2.shape == (B2, M2)
    assert jnp.allclose(out2, ref2, atol=3e-2, rtol=3e-2), "K-tiled path mismatch"

    print("KERNEL_OK")
</pallas_src>

<mosaic_0001>
module attributes {stable_mosaic.version = 11 : i64} {
  func.func @_resident_kernel(%arg0: i32, %arg1: memref<128x32xf32, #tpu.memory_space<vmem>>, %arg2: memref<32x128xbf16, #tpu.memory_space<vmem>>, %arg3: memref<1x128xf32, #tpu.memory_space<vmem>>, %arg4: memref<128x32xbf16, #tpu.memory_space<vmem>>, %arg5: memref<1x32xf32, #tpu.memory_space<vmem>>, %arg6: memref<128x32xf32, #tpu.memory_space<vmem>>) attributes {dimension_semantics = [#tpu.dimension_semantics<parallel>], iteration_bounds = array<i64: 1>, scalar_prefetch = 0 : i64, scratch_operands = 0 : i64, tpu.core_type = #tpu.core_type<tc>, window_params = [{transform_indices = @transform_0, window_bounds = array<i64: 128, 32>}, {pipeline_mode = #tpu.pipeline_mode<synchronous>, transform_indices = @transform_1, window_bounds = array<i64: 32, 128>}, {pipeline_mode = #tpu.pipeline_mode<synchronous>, transform_indices = @transform_2, window_bounds = array<i64: 1, 128>}, {pipeline_mode = #tpu.pipeline_mode<synchronous>, transform_indices = @transform_3, window_bounds = array<i64: 128, 32>}, {pipeline_mode = #tpu.pipeline_mode<synchronous>, transform_indices = @transform_4, window_bounds = array<i64: 1, 32>}, {transform_indices = @transform_5, window_bounds = array<i64: 128, 32>}]} {
    %c0 = arith.constant 0 : index
    %c0_0 = arith.constant 0 : index
    %0 = vector.load %arg1[%c0, %c0_0] : memref<128x32xf32, #tpu.memory_space<vmem>>, vector<128x32xf32>
    %1 = arith.truncf %0 : vector<128x32xf32> to vector<128x32xbf16>
    %c0_1 = arith.constant 0 : index
    %c0_2 = arith.constant 0 : index
    %2 = vector.load %arg2[%c0_1, %c0_2] : memref<32x128xbf16, #tpu.memory_space<vmem>>, vector<32x128xbf16>
    %cst = arith.constant dense<0.000000e+00> : vector<128x128xf32>
    %3 = tpu.matmul %1, %2, %cst {dimension_numbers = #tpu.dot_dimension_numbers<[1], [0], [0], [1], [0, 0, 1, 1], [], []>} : vector<128x32xbf16>, vector<32x128xbf16>, vector<128x128xf32> -> vector<128x128xf32>
    %c0_3 = arith.constant 0 : index
    %c0_4 = arith.constant 0 : index
    %4 = vector.load %arg3[%c0_3, %c0_4] : memref<1x128xf32, #tpu.memory_space<vmem>>, vector<1x128xf32>
    %5 = vector.broadcast %4 : vector<1x128xf32> to vector<128x128xf32>
    %6 = arith.addf %3, %5 : vector<128x128xf32>
    %cst_5 = arith.constant 0.000000e+00 : f32
    %7 = vector.broadcast %cst_5 : f32 to vector<128x128xf32>
    %8 = arith.maximumf %6, %7 : vector<128x128xf32>
    %9 = arith.truncf %8 : vector<128x128xf32> to vector<128x128xbf16>
    %c0_6 = arith.constant 0 : index
    %c0_7 = arith.constant 0 : index
    %10 = vector.load %arg4[%c0_6, %c0_7] : memref<128x32xbf16, #tpu.memory_space<vmem>>, vector<128x32xbf16>
    %cst_8 = arith.constant dense<0.000000e+00> : vector<128x32xf32>
    %11 = tpu.matmul %9, %10, %cst_8 {dimension_numbers = #tpu.dot_dimension_numbers<[1], [0], [0], [1], [0, 0, 1, 1], [], []>} : vector<128x128xbf16>, vector<128x32xbf16>, vector<128x32xf32> -> vector<128x32xf32>
    %c0_9 = arith.constant 0 : index
    %c0_10 = arith.constant 0 : index
    %12 = vector.load %arg5[%c0_9, %c0_10] : memref<1x32xf32, #tpu.memory_space<vmem>>, vector<1x32xf32>
    %13 = vector.broadcast %12 : vector<1x32xf32> to vector<128x32xf32>
    %14 = arith.addf %11, %13 : vector<128x32xf32>
    %cst_11 = arith.constant 0.000000e+00 : f32
    %15 = vector.broadcast %cst_11 : f32 to vector<128x32xf32>
    %16 = arith.maximumf %14, %15 : vector<128x32xf32>
    %c0_12 = arith.constant 0 : index
    %c0_13 = arith.constant 0 : index
    %17 = vector.load %arg6[%c0_12, %c0_13] : memref<128x32xf32, #tpu.memory_space<vmem>>, vector<128x32xf32>
    tpu.vector_store %arg6[%c0_12, %c0_13], %16 {strides = array<i32>} : memref<128x32xf32, #tpu.memory_space<vmem>>, vector<128x32xf32>,
    return
  }
  func.func @transform_0(%arg0: i32) -> (i32, i32) {
    %c0_i32 = arith.constant 0 : i32
    %c0_i32_0 = arith.constant 0 : i32
    return %arg0, %c0_i32 : i32, i32
  }
  func.func @transform_1(%arg0: i32) -> (i32, i32) {
    %c0_i32 = arith.constant 0 : i32
    %c0_i32_0 = arith.constant 0 : i32
    %c0_i32_1 = arith.constant 0 : i32
    return %c0_i32, %c0_i32_0 : i32, i32
  }
  func.func @transform_2(%arg0: i32) -> (i32, i32) {
    %c0_i32 = arith.constant 0 : i32
    %c0_i32_0 = arith.constant 0 : i32
    %c0_i32_1 = arith.constant 0 : i32
    return %c0_i32, %c0_i32_0 : i32, i32
  }
  func.func @transform_3(%arg0: i32) -> (i32, i32) {
    %c0_i32 = arith.constant 0 : i32
    %c0_i32_0 = arith.constant 0 : i32
    %c0_i32_1 = arith.constant 0 : i32
    return %c0_i32, %c0_i32_0 : i32, i32
  }
  func.func @transform_4(%arg0: i32) -> (i32, i32) {
    %c0_i32 = arith.constant 0 : i32
    %c0_i32_0 = arith.constant 0 : i32
    %c0_i32_1 = arith.constant 0 : i32
    return %c0_i32, %c0_i32_0 : i32, i32
  }
  func.func @transform_5(%arg0: i32) -> (i32, i32) {
    %c0_i32 = arith.constant 0 : i32
    %c0_i32_0 = arith.constant 0 : i32
    return %arg0, %c0_i32 : i32, i32
  }
}

module attributes {stable_mosaic.version = 11 : i64} {
  func.func @_resident_kernel(%arg0: i32, %arg1: memref<128x32xf32, #tpu.memory_space<vmem>>, %arg2: memref<32x128xbf16, #tpu.memory_space<vmem>>, %arg3: memref<1x128xf32, #tpu.memory_space<vmem>>, %arg4: memref<128x32xbf16, #tpu.memory_space<vmem>>, %arg5: memref<1x32xf32, #tpu.memory_space<vmem>>, %arg6: memref<128x32xf32, #tpu.memory_space<vmem>>) attributes {dimension_semantics = [#tpu.dimension_semantics<parallel>], iteration_bounds = array<i64: 1>, scalar_prefetch = 0 : i64, scratch_operands = 0 : i64, tpu.core_type = #tpu.core_type<tc>, window_params = [{transform_indices = @transform_0, window_bounds = array<i64: 128, 32>}, {pipeline_mode = #tpu.pipeline_mode<synchronous>, transform_indices = @transform_1, window_bounds = array<i64: 32, 128>}, {pipeline_mode = #tpu.pipeline_mode<synchronous>, transform_indices = @transform_2, window_bounds = array<i64: 1, 128>}, {pipeline_mode = #tpu.pipeline_mode<synchronous>, transform_indices = @transform_3, window_bounds = array<i64: 128, 32>}, {pipeline_mode = #tpu.pipeline_mode<synchronous>, transform_indices = @transform_4, window_bounds = array<i64: 1, 32>}, {transform_indices = @transform_5, window_bounds = array<i64: 128, 32>}]} {
    %c0 = arith.constant 0 : index
    %c0_0 = arith.constant 0 : index
    %0 = vector.load %arg1[%c0, %c0_0] : memref<128x32xf32, #tpu.memory_space<vmem>>, vector<128x32xf32>
    %1 = arith.truncf %0 : vector<128x32xf32> to vector<128x32xbf16>
    %c0_1 = arith.constant 0 : index
    %c0_2 = arith.constant 0 : index
    %2 = vector.load %arg2[%c0_1, %c0_2] : memref<32x128xbf16, #tpu.memory_space<vmem>>, vector<32x128xbf16>
    %cst = arith.constant dense<0.000000e+00> : vector<128x128xf32>
    %3 = tpu.matmul %1, %2, %cst {dimension_numbers = #tpu.dot_dimension_numbers<[1], [0], [0], [1], [0, 0, 1, 1], [], []>} : vector<128x32xbf16>, vector<32x128xbf16>, vector<128x128xf32> -> vector<128x128xf32>
    %c0_3 = arith.constant 0 : index
    %c0_4 = arith.constant 0 : index
    %4 = vector.load %arg3[%c0_3, %c0_4] : memref<1x128xf32, #tpu.memory_space<vmem>>, vector<1x128xf32>
    %5 = vector.broadcast %4 : vector<1x128xf32> to vector<128x128xf32>
    %6 = arith.addf %3, %5 : vector<128x128xf32>
    %cst_5 = arith.constant 0.000000e+00 : f32
    %7 = vector.broadcast %cst_5 : f32 to vector<128x128xf32>
    %8 = arith.maximumf %6, %7 : vector<128x128xf32>
    %9 = arith.truncf %8 : vector<128x128xf32> to vector<128x128xbf16>
    %c0_6 = arith.constant 0 : index
    %c0_7 = arith.constant 0 : index
    %10 = vector.load %arg4[%c0_6, %c0_7] : memref<128x32xbf16, #tpu.memory_space<vmem>>, vector<128x32xbf16>
    %cst_8 = arith.constant dense<0.000000e+00> : vector<128x32xf32>
    %11 = tpu.matmul %9, %10, %cst_8 {dimension_numbers = #tpu.dot_dimension_numbers<[1], [0], [0], [1], [0, 0, 1, 1], [], []>} : vector<128x128xbf16>, vector<128x32xbf16>, vector<128x32xf32> -> vector<128x32xf32>
    %c0_9 = arith.constant 0 : index
    %c0_10 = arith.constant 0 : index
    %12 = vector.load %arg5[%c0_9, %c0_10] : memref<1x32xf32, #tpu.memory_space<vmem>>, vector<1x32xf32>
    %13 = vector.broadcast %12 : vector<1x32xf32> to vector<128x32xf32>
    %14 = arith.addf %11, %13 : vector<128x32xf32>
    %cst_11 = arith.constant 0.000000e+00 : f32
    %15 = vector.broadcast %cst_11 : f32 to vector<128x32xf32>
    %16 = arith.maximumf %14, %15 : vector<128x32xf32>
    %c0_12 = arith.constant 0 : index
    %c0_13 = arith.constant 0 : index
    %17 = vector.load %arg6[%c0_12, %c0_13] : memref<128x32xf32, #tpu.memory_space<vmem>>, vector<128x32xf32>
    tpu.vector_store %arg6[%c0_12, %c0_13], %16 {strides = array<i32>} : memref<128x32xf32, #tpu.memory_space<vmem>>, vector<128x32xf32>,
    return
  }
  func.func @transform_0(%arg0: i32) -> (i32, i32) {
    %c0_i32 = arith.constant 0 : i32
    %c0_i32_0 = arith.constant 0 : i32
    return %arg0, %c0_i32 : i32, i32
  }
  func.func @transform_1(%arg0: i32) -> (i32, i32) {
    %c0_i32 = arith.constant 0 : i32
    %c0_i32_0 = arith.constant 0 : i32
    %c0_i32_1 = arith.constant 0 : i32
    return %c0_i32, %c0_i32_0 : i32, i32
  }
  func.func @transform_2(%arg0: i32) -> (i32, i32) {
    %c0_i32 = arith.constant 0 : i32
    %c0_i32_0 = arith.constant 0 : i32
    %c0_i32_1 = arith.constant 0 : i32
    return %c0_i32, %c0_i32_0 : i32, i32
  }
  func.func @transform_3(%arg0: i32) -> (i32, i32) {
    %c0_i32 = arith.constant 0 : i32
    %c0_i32_0 = arith.constant 0 : i32
    %c0_i32_1 = arith.constant 0 : i32
    return %c0_i32, %c0_i32_0 : i32, i32
  }
  func.func @transform_4(%arg0: i32) -> (i32, i32) {
    %c0_i32 = arith.constant 0 : i32
    %c0_i32_0 = arith.constant 0 : i32
    %c0_i32_1 = arith.constant 0 : i32
    return %c0_i32, %c0_i32_0 : i32, i32
  }
  func.func @transform_5(%arg0: i32) -> (i32, i32) {
    %c0_i32 = arith.constant 0 : i32
    %c0_i32_0 = arith.constant 0 : i32
    return %arg0, %c0_i32 : i32, i32
  }
}

</mosaic_0001>

<llo_original>
// kernel: tpu_custom_call.1
$region0: #{tpu_custom_call.1}
  #allocation0 [shape = 'u32[]', space=smem, size = 0x4, offset = 0x4, fixed_abs, tag = 'smem constant byte address 0x4 - core index']
  #allocation1 [shape = 'u32[144,128]{1,0:T(1,128)}', space=vmem, size = 0x12000, scoped, tag = 'internal scratch']
  %s0 = inlined_call_operand.vmem [shape: f32[16,32], index: 0, kind: input, shape index: {}]
  %s1 = inlined_call_operand.vmem [shape: bf16[32,128], index: 1, kind: input, shape index: {}]
  %s2 = inlined_call_operand.vmem [shape: f32[1,128], index: 2, kind: input, shape index: {}]
  %s3 = inlined_call_operand.vmem [shape: bf16[128,32], index: 3, kind: input, shape index: {}]
  %s4 = inlined_call_operand.vmem [shape: f32[1,32], index: 4, kind: input, shape index: {}]
  %s5 = inlined_call_operand.hbm [shape: f32[16,32], index: 5, kind: output, shape index: {}]
  %s6 = sld [smem:[#allocation0]]
  $region30: #{tpu_custom_call.1} parent=0
    _
  %s8 = ssub.s32 1, %s6
  %s9 = scalar_select 0, %s8, %s6
  $region1: #{tpu_custom_call.1} parent=0
    #allocation2 [shape = 'u8[65536]{0}', space=vmem, size = 0x10000, scoped, tag = 'output window, operand 0, single buffered']
    #allocation3 [shape = 's32[1]{0}', space=sflag, size = 0x4, scoped, tag = 'scoped memory for tpu_custom_call.1']
    %10 = vsyncpa [#allocation3], 0
    // Predicated region
    $region2: #{tpu_custom_call.1} parent=1 // pred_check
      _
    $region3: #{tpu_custom_call.1} parent=1 // pred_check_branch
      %12 = sbr.rel (0) target = $region5
    $region4: #{tpu_custom_call.1} parent=1 // pred_region
      _
    $region5: #{tpu_custom_call.1} parent=1 // pred_fallthru
      _
    // Predicated region
    $region6: #{tpu_custom_call.1} parent=1 // pred_check
      _
    $region7: #{tpu_custom_call.1} parent=1 // pred_check_branch
      %14 = sbr.rel (0) target = $region9
    $region8: #{tpu_custom_call.1} parent=1 // pred_region
      _
    $region9: #{tpu_custom_call.1} parent=1 // pred_fallthru
      _
    // Predicated region
    $region10: #{tpu_custom_call.1} parent=1 // pred_check
      _
    $region11: #{tpu_custom_call.1} parent=1 // pred_check_branch
      %16 = sbr.rel (0) target = $region13
    $region12: #{tpu_custom_call.1} parent=1 // pred_region
      _
    $region13: #{tpu_custom_call.1} parent=1 // pred_fallthru
      _
    // Predicated region
    $region14: #{tpu_custom_call.1} parent=1 // pred_check
      _
    $region15: #{tpu_custom_call.1} parent=1 // pred_check_branch
      %18 = sbr.rel (0) target = $region17
    $region16: #{tpu_custom_call.1} parent=1 // pred_region
      _
    $region17: #{tpu_custom_call.1} parent=1 // pred_fallthru
      _
    // Predicated region
    $region18: #{tpu_custom_call.1} parent=1 // pred_check
      _
    $region19: #{tpu_custom_call.1} parent=1 // pred_check_branch
      %20 = sbr.rel (0) target = $region21
    $region20: #{tpu_custom_call.1} parent=1 // pred_region
      _
    $region21: #{tpu_custom_call.1} parent=1 // pred_fallthru
      _
    %v22 = vld [vmem:[%s0] sm:$0xff]
    %v23 = vld [vmem:[%s0 + $0x8] sm:$0xff]
    %v24 = vld [vmem:[%s0 + $0x10] sm:$0xff]
    %v25 = vld [vmem:[%s0 + $0x18] sm:$0xff]
    %v26 = vld [vmem:[%s0 + $0x20] sm:$0xff]
    %v27 = vld [vmem:[%s0 + $0x28] sm:$0xff]
    %v28 = vld [vmem:[%s0 + $0x30] sm:$0xff]
    %v29 = vld [vmem:[%s0 + $0x38] sm:$0xff]
    %v30 = vld [vmem:[%s0 + $0x40] sm:$0xff]
    %v31 = vld [vmem:[%s0 + $0x48] sm:$0xff]
    %v32 = vld [vmem:[%s0 + $0x50] sm:$0xff]
    %v33 = vld [vmem:[%s0 + $0x58] sm:$0xff]
    %v34 = vld [vmem:[%s0 + $0x60] sm:$0xff]
    %v35 = vld [vmem:[%s0 + $0x68] sm:$0xff]
    %v36 = vld [vmem:[%s0 + $0x70] sm:$0xff]
    %v37 = vld [vmem:[%s0 + $0x78] sm:$0xff]
    %v38 = vpack.c.bf16 %v23, %v22
    %v39 = vpack.c.bf16 %v25, %v24
    %v40 = vpack.c.bf16 %v27, %v26
    %v41 = vpack.c.bf16 %v29, %v28
    %v42 = vpack.c.bf16 %v31, %v30
    %v43 = vpack.c.bf16 %v33, %v32
    %v44 = vpack.c.bf16 %v35, %v34
    %v45 = vpack.c.bf16 %v37, %v36
    %v46 = vld [vmem:[%s1] sm:$0xf]
    %v47 = vld [vmem:[%s1 + $0x4] sm:$0xf]
    %v48 = vld [vmem:[%s1 + $0x8] sm:$0xf]
    %v49 = vld [vmem:[%s1 + $0xc] sm:$0xf]
    %v50 = vld [vmem:[%s2] sm:$0x1]
    %v52 = vlaneseq
    %v53 = vshrl.u32 %v52, 7
    %v54 = vsub.s32 0, %v53
    %v55 = vrot.slane %v50, %v54
    %v61 = vunpack.c.l.b16 %v46
    %v62 = vunpack.c.l.b16 %v47
    %v63 = vunpack.c.l.b16 %v48
    %v64 = vunpack.c.l.b16 %v49
    %v65 = vpack.c.b16 %v62, %v61
    %v66 = vpack.c.b16 %v64, %v63
    %vm69 = vcmask 261120
    %v71 = vsel %vm69, %v38, 0
    %v74 = vsel %vm69, %v39, 0
    %v77 = vsel %vm69, %v40, 0
    %v80 = vsel %vm69, %v41, 0
    %v83 = vsel %vm69, %v42, 0
    %v86 = vsel %vm69, %v43, 0
    %v89 = vsel %vm69, %v44, 0
    %v92 = vsel %vm69, %v45, 0
    %94 = vmatprep.subr.bf16.mxu0 0
    %95 = vmatpush1.bf16.msra.mxu0 %v65
    %96 = vmatprep.subr.bf16.mxu0 0
    %97 = vmatpush1.bf16.msra.mxu0 %v66
    %98 = vmatprep.subr.bf16.mxu0 0
    %99 = vmatpush1.bf16.msra.mxu0 0
    %100 = vmatprep.subr.bf16.mxu0 0
    %101 = vmatpush1.bf16.msra.mxu0 0
    %102 = vmatprep.subr.bf16.mxu0 0
    %103 = vmatpush1.bf16.msra.mxu0 0
    %104 = vmatprep.subr.bf16.mxu0 0
    %105 = vmatpush1.bf16.msra.mxu0 0
    %106 = vmatprep.subr.bf16.mxu0 0
    %107 = vmatpush1.bf16.msra.mxu0 0
    %108 = vmatprep.subr.bf16.mxu0 0
    %109 = vmatpush1.bf16.msra.mxu0 0
    %110 = vmatprep.subr.bf16.mxu0 0
    %111 = vmatpush1.bf16.msra.mxu0 0
    %112 = vmatprep.subr.bf16.mxu0 0
    %113 = vmatpush1.bf16.msra.mxu0 0
    %114 = vmatprep.subr.bf16.mxu0 0
    %115 = vmatpush1.bf16.msra.mxu0 0
    %116 = vmatprep.subr.bf16.mxu0 0
    %117 = vmatpush1.bf16.msra.mxu0 0
    %118 = vmatprep.subr.bf16.mxu0 0
    %119 = vmatpush1.bf16.msra.mxu0 0
    %120 = vmatprep.subr.bf16.mxu0 0
    %121 = vmatpush1.bf16.msra.mxu0 0
    %122 = vmatprep.subr.bf16.mxu0 0
    %123 = vmatpush1.bf16.msra.mxu0 0
    %124 = vmatprep.subr.bf16.mxu0 0
    %125 = vmatpush1.bf16.msra.mxu0 0
    %126 = vmatprep.mubr.bf16.mxu0 0
    %127 = vmatmul.mubr.bf16.gmra.mrb[0].mxu0 %v71
    %v128 = vpop.f32.mrb[0].mxu0
    %v129 = vadd.f32 %v55, %v128
    %v130 = vpop.f32.mrb[0].mxu0
    %v131 = vpop.f32.mrb[0].mxu0
    %v132 = vadd.f32 %v55, %v131
    %v133 = vpop.f32.mrb[0].mxu0
    %134 = vmatprep.mubr.bf16.mxu0 0
    %135 = vmatmul.mubr.bf16.gmra.mrb[0].mxu0 %v74
    %v136 = vpop.f32.mrb[0].mxu0
    %v137 = vadd.f32 %v55, %v136
    %v138 = vpop.f32.mrb[0].mxu0
    %v139 = vpop.f32.mrb[0].mxu0
    %v140 = vadd.f32 %v55, %v139
    %v141 = vpop.f32.mrb[0].mxu0
    %142 = vmatprep.mubr.bf16.mxu0 0
    %143 = vmatmul.mubr.bf16.gmra.mrb[0].mxu0 %v77
    %v144 = vpop.f32.mrb[0].mxu0
    %v145 = vadd.f32 %v55, %v144
    %v146 = vpop.f32.mrb[0].mxu0
    %v147 = vpop.f32.mrb[0].mxu0
    %v148 = vadd.f32 %v55, %v147
    %v149 = vpop.f32.mrb[0].mxu0
    %150 = vmatprep.mubr.bf16.mxu0 0
    %151 = vmatmul.mubr.bf16.gmra.mrb[0].mxu0 %v80
    %v152 = vpop.f32.mrb[0].mxu0
    %v153 = vadd.f32 %v55, %v152
    %v154 = vpop.f32.mrb[0].mxu0
    %v155 = vpop.f32.mrb[0].mxu0
    %v156 = vadd.f32 %v55, %v155
    %v157 = vpop.f32.mrb[0].mxu0
    %158 = vmatprep.mubr.bf16.mxu0 0
    %159 = vmatmul.mubr.bf16.gmra.mrb[0].mxu0 %v83
    %v160 = vpop.f32.mrb[0].mxu0
    %v161 = vadd.f32 %v55, %v160
    %v162 = vpop.f32.mrb[0].mxu0
    %v163 = vpop.f32.mrb[0].mxu0
    %v164 = vadd.f32 %v55, %v163
    %v165 = vpop.f32.mrb[0].mxu0
    %166 = vmatprep.mubr.bf16.mxu0 0
    %167 = vmatmul.mubr.bf16.gmra.mrb[0].mxu0 %v86
    %v168 = vpop.f32.mrb[0].mxu0
    %v169 = vadd.f32 %v55, %v168
    %v170 = vpop.f32.mrb[0].mxu0
    %v171 = vpop.f32.mrb[0].mxu0
    %v172 = vadd.f32 %v55, %v171
    %v173 = vpop.f32.mrb[0].mxu0
    %174 = vmatprep.mubr.bf16.mxu0 0
    %175 = vmatmul.mubr.bf16.gmra.mrb[0].mxu0 %v89
    %v176 = vpop.f32.mrb[0].mxu0
    %v177 = vadd.f32 %v55, %v176
    %v178 = vpop.f32.mrb[0].mxu0
    %v179 = vpop.f32.mrb[0].mxu0
    %v180 = vadd.f32 %v55, %v179
    %v181 = vpop.f32.mrb[0].mxu0
    %182 = vmatprep.mubr.bf16.mxu0 0
    %183 = vmatmul.mubr.bf16.gmra.mrb[0].mxu0 %v92
    %v184 = vpop.f32.mrb[0].mxu0
    %v185 = vadd.f32 %v55, %v184
    %v186 = vpop.f32.mrb[0].mxu0
    %v187 = vpop.f32.mrb[0].mxu0
    %v188 = vadd.f32 %v55, %v187
    %v189 = vpop.f32.mrb[0].mxu0
    %190 = vdwg.mxu0
    %v191 = vmax.f32 %v129, 0.0
    %v192 = vmax.f32 %v132, 0.0
    %v193 = vmax.f32 %v137, 0.0
    %v194 = vmax.f32 %v140, 0.0
    %v195 = vmax.f32 %v145, 0.0
    %v196 = vmax.f32 %v148, 0.0
    %v197 = vmax.f32 %v153, 0.0
    %v198 = vmax.f32 %v156, 0.0
    %v199 = vmax.f32 %v161, 0.0
    %v200 = vmax.f32 %v164, 0.0
    %v201 = vmax.f32 %v169, 0.0
    %v202 = vmax.f32 %v172, 0.0
    %v203 = vmax.f32 %v177, 0.0
    %v204 = vmax.f32 %v180, 0.0
    %v205 = vmax.f32 %v185, 0.0
    %v206 = vmax.f32 %v188, 0.0
    %v207 = vpack.c.bf16 %v192, %v191
    %v208 = vpack.c.bf16 %v194, %v193
    %v209 = vpack.c.bf16 %v196, %v195
    %v210 = vpack.c.bf16 %v198, %v197
    %v211 = vpack.c.bf16 %v200, %v199
    %v212 = vpack.c.bf16 %v202, %v201
    %v213 = vpack.c.bf16 %v204, %v203
    %v214 = vpack.c.bf16 %v206, %v205
    %v215 = vld [vmem:[%s3] sm:$0xf]
    %v216 = vld [vmem:[%s3 + $0x4] sm:$0xf]
    %v217 = vld [vmem:[%s3 + $0x8] sm:$0xf]
    %v218 = vld [vmem:[%s3 + $0xc] sm:$0xf]
    %v219 = vld [vmem:[%s3 + $0x10] sm:$0xf]
    %v220 = vld [vmem:[%s3 + $0x14] sm:$0xf]
    %v221 = vld [vmem:[%s3 + $0x18] sm:$0xf]
    %v222 = vld [vmem:[%s3 + $0x1c] sm:$0xf]
    %v223 = vld [vmem:[%s3 + $0x20] sm:$0xf]
    %v224 = vld [vmem:[%s3 + $0x24] sm:$0xf]
    %v225 = vld [vmem:[%s3 + $0x28] sm:$0xf]
    %v226 = vld [vmem:[%s3 + $0x2c] sm:$0xf]
    %v227 = vld [vmem:[%s3 + $0x30] sm:$0xf]
    %v228 = vld [vmem:[%s3 + $0x34] sm:$0xf]
    %v229 = vld [vmem:[%s3 + $0x38] sm:$0xf]
    %v230 = vld [vmem:[%s3 + $0x3c] sm:$0xf]
    %v231 = vld [vmem:[%s4] sm:$0x1]
    %v233 = vlaneseq
    %v234 = vshrl.u32 %v233, 7
    %v235 = vsub.s32 0, %v234
    %v236 = vrot.slane %v231, %v235
    %v254 = vunpack.c.l.b16 %v215
    %v255 = vunpack.c.l.b16 %v216
    %v256 = vunpack.c.l.b16 %v217
    %v257 = vunpack.c.l.b16 %v218
    %v258 = vunpack.c.l.b16 %v219
    %v259 = vunpack.c.l.b16 %v220
    %v260 = vunpack.c.l.b16 %v221
    %v261 = vunpack.c.l.b16 %v222
    %v262 = vunpack.c.l.b16 %v223
    %v263 = vunpack.c.l.b16 %v224
    %v264 = vunpack.c.l.b16 %v225
    %v265 = vunpack.c.l.b16 %v226
    %v266 = vunpack.c.l.b16 %v227
    %v267 = vunpack.c.l.b16 %v228
    %v268 = vunpack.c.l.b16 %v229
    %v269 = vunpack.c.l.b16 %v230
    %v270 = vpack.c.b16 %v255, %v254
    %v271 = vpack.c.b16 %v257, %v256
    %v272 = vpack.c.b16 %v259, %v258
    %v273 = vpack.c.b16 %v261, %v260
    %v274 = vpack.c.b16 %v263, %v262
    %v275 = vpack.c.b16 %v265, %v264
    %v276 = vpack.c.b16 %v267, %v266
    %v277 = vpack.c.b16 %v269, %v268
    %286 = vmatprep.subr.bf16.mxu0 0
    %287 = vmatpush1.bf16.msra.mxu0 %v270
    %288 = vmatprep.subr.bf16.mxu0 0
    %289 = vmatpush1.bf16.msra.mxu0 %v271
    %290 = vmatprep.subr.bf16.mxu0 0
    %291 = vmatpush1.bf16.msra.mxu0 %v272
    %292 = vmatprep.subr.bf16.mxu0 0
    %293 = vmatpush1.bf16.msra.mxu0 %v273
    %294 = vmatprep.subr.bf16.mxu0 0
    %295 = vmatpush1.bf16.msra.mxu0 %v274
    %296 = vmatprep.subr.bf16.mxu0 0
    %297 = vmatpush1.bf16.msra.mxu0 %v275
    %298 = vmatprep.subr.bf16.mxu0 0
    %299 = vmatpush1.bf16.msra.mxu0 %v276
    %300 = vmatprep.subr.bf16.mxu0 0
    %301 = vmatpush1.bf16.msra.mxu0 %v277
    %302 = vmatprep.subr.bf16.mxu0 0
    %303 = vmatpush1.bf16.msra.mxu0 0
    %304 = vmatprep.subr.bf16.mxu0 0
    %305 = vmatpush1.bf16.msra.mxu0 0
    %306 = vmatprep.subr.bf16.mxu0 0
    %307 = vmatpush1.bf16.msra.mxu0 0
    %308 = vmatprep.subr.bf16.mxu0 0
    %309 = vmatpush1.bf16.msra.mxu0 0
    %310 = vmatprep.subr.bf16.mxu0 0
    %311 = vmatpush1.bf16.msra.mxu0 0
    %312 = vmatprep.subr.bf16.mxu0 0
    %313 = vmatpush1.bf16.msra.mxu0 0
    %314 = vmatprep.subr.bf16.mxu0 0
    %315 = vmatpush1.bf16.msra.mxu0 0
    %316 = vmatprep.subr.bf16.mxu0 0
    %317 = vmatpush1.bf16.msra.mxu0 0
    %318 = vmatprep.mubr.bf16.mxu0 0
    %319 = vmatmul.mubr.bf16.gmra.mrb[0].mxu0 %v207
    %v320 = vpop.f32.mrb[0].mxu0
    %v321 = vadd.f32 %v236, %v320
    %v322 = vpop.f32.mrb[0].mxu0
    %v323 = vpop.f32.mrb[0].mxu0
    %v324 = vadd.f32 %v236, %v323
    %v325 = vpop.f32.mrb[0].mxu0
    %326 = vmatprep.mubr.bf16.mxu0 0
    %327 = vmatmul.mubr.bf16.gmra.mrb[0].mxu0 %v208
    %v328 = vpop.f32.mrb[0].mxu0
    %v329 = vadd.f32 %v236, %v328
    %v330 = vpop.f32.mrb[0].mxu0
    %v331 = vpop.f32.mrb[0].mxu0
    %v332 = vadd.f32 %v236, %v331
    %v333 = vpop.f32.mrb[0].mxu0
    %334 = vmatprep.mubr.bf16.mxu0 0
    %335 = vmatmul.mubr.bf16.gmra.mrb[0].mxu0 %v209
    %v336 = vpop.f32.mrb[0].mxu0
    %v337 = vadd.f32 %v236, %v336
    %v338 = vpop.f32.mrb[0].mxu0
    %v339 = vpop.f32.mrb[0].mxu0
    %v340 = vadd.f32 %v236, %v339
    %v341 = vpop.f32.mrb[0].mxu0
    %342 = vmatprep.mubr.bf16.mxu0 0
    %343 = vmatmul.mubr.bf16.gmra.mrb[0].mxu0 %v210
    %v344 = vpop.f32.mrb[0].mxu0
    %v345 = vadd.f32 %v236, %v344
    %v346 = vpop.f32.mrb[0].mxu0
    %v347 = vpop.f32.mrb[0].mxu0
    %v348 = vadd.f32 %v236, %v347
    %v349 = vpop.f32.mrb[0].mxu0
    %350 = vmatprep.mubr.bf16.mxu0 0
    %351 = vmatmul.mubr.bf16.gmra.mrb[0].mxu0 %v211
    %v352 = vpop.f32.mrb[0].mxu0
    %v353 = vadd.f32 %v236, %v352
    %v354 = vpop.f32.mrb[0].mxu0
    %v355 = vpop.f32.mrb[0].mxu0
    %v356 = vadd.f32 %v236, %v355
    %v357 = vpop.f32.mrb[0].mxu0
    %358 = vmatprep.mubr.bf16.mxu0 0
    %359 = vmatmul.mubr.bf16.gmra.mrb[0].mxu0 %v212
    %v360 = vpop.f32.mrb[0].mxu0
    %v361 = vadd.f32 %v236, %v360
    %v362 = vpop.f32.mrb[0].mxu0
    %v363 = vpop.f32.mrb[0].mxu0
    %v364 = vadd.f32 %v236, %v363
    %v365 = vpop.f32.mrb[0].mxu0
    %366 = vmatprep.mubr.bf16.mxu0 0
    %367 = vmatmul.mubr.bf16.gmra.mrb[0].mxu0 %v213
    %v368 = vpop.f32.mrb[0].mxu0
    %v369 = vadd.f32 %v236, %v368
    %v370 = vpop.f32.mrb[0].mxu0
    %v371 = vpop.f32.mrb[0].mxu0
    %v372 = vadd.f32 %v236, %v371
    %v373 = vpop.f32.mrb[0].mxu0
    %374 = vmatprep.mubr.bf16.mxu0 0
    %375 = vmatmul.mubr.bf16.gmra.mrb[0].mxu0 %v214
    %v376 = vpop.f32.mrb[0].mxu0
    %v377 = vadd.f32 %v236, %v376
    %v378 = vpop.f32.mrb[0].mxu0
    %v379 = vpop.f32.mrb[0].mxu0
    %v380 = vadd.f32 %v236, %v379
    %v381 = vpop.f32.mrb[0].mxu0
    %382 = vdwg.mxu0
    %v383 = vmax.f32 %v321, 0.0
    %v384 = vmax.f32 %v324, 0.0
    %v385 = vmax.f32 %v329, 0.0
    %v386 = vmax.f32 %v332, 0.0
    %v387 = vmax.f32 %v337, 0.0
    %v388 = vmax.f32 %v340, 0.0
    %v389 = vmax.f32 %v345, 0.0
    %v390 = vmax.f32 %v348, 0.0
    %v391 = vmax.f32 %v353, 0.0
    %v392 = vmax.f32 %v356, 0.0
    %v393 = vmax.f32 %v361, 0.0
    %v394 = vmax.f32 %v364, 0.0
    %v395 = vmax.f32 %v369, 0.0
    %v396 = vmax.f32 %v372, 0.0
    %v397 = vmax.f32 %v377, 0.0
    %v398 = vmax.f32 %v380, 0.0
    %399 = vst.msk [vmem:[#allocation2] sm:$0xff] %vm69, %v383
    %400 = vst.msk [vmem:[#allocation2 + $0x8] sm:$0xff] %vm69, %v384
    %401 = vst.msk [vmem:[#allocation2 + $0x10] sm:$0xff] %vm69, %v385
    %402 = vst.msk [vmem:[#allocation2 + $0x18] sm:$0xff] %vm69, %v386
    %403 = vst.msk [vmem:[#allocation2 + $0x20] sm:$0xff] %vm69, %v387
    %404 = vst.msk [vmem:[#allocation2 + $0x28] sm:$0xff] %vm69, %v388
    %405 = vst.msk [vmem:[#allocation2 + $0x30] sm:$0xff] %vm69, %v389
    %406 = vst.msk [vmem:[#allocation2 + $0x38] sm:$0xff] %vm69, %v390
    %407 = vst.msk [vmem:[#allocation2 + $0x40] sm:$0xff] %vm69, %v391
    %408 = vst.msk [vmem:[#allocation2 + $0x48] sm:$0xff] %vm69, %v392
    %409 = vst.msk [vmem:[#allocation2 + $0x50] sm:$0xff] %vm69, %v393
    %410 = vst.msk [vmem:[#allocation2 + $0x58] sm:$0xff] %vm69, %v394
    %411 = vst.msk [vmem:[#allocation2 + $0x60] sm:$0xff] %vm69, %v395
    %412 = vst.msk [vmem:[#allocation2 + $0x68] sm:$0xff] %vm69, %v396
    %413 = vst.msk [vmem:[#allocation2 + $0x70] sm:$0xff] %vm69, %v397
    %414 = vst.msk [vmem:[#allocation2 + $0x78] sm:$0xff] %vm69, %v398
    // Predicated region
    $region22: #{tpu_custom_call.1} parent=1 // pred_check
      _
    $region23: #{tpu_custom_call.1} parent=1 // pred_check_branch
      %416 = sbr.rel (0) target = $region25
    $region24: #{tpu_custom_call.1} parent=1 // pred_region
      %s418 = ssub.s32 2048, 256
      %419 = vsyncadd [#allocation3], %s418
      %s420 = sshll.u32 [#allocation2], 4
      %s421 = int_to_ptr.vmem [resolvable:$true] %s420
      %426 = dma.vmem_to_hbm [thread:$0]  %s421, 256, %s5, [#allocation3], 128, 128, 8
    $region25: #{tpu_custom_call.1} parent=1 // pred_fallthru
      _
    // Predicated region
    $region26: #{tpu_custom_call.1} parent=1 // pred_check
      _
    $region27: #{tpu_custom_call.1} parent=1 // pred_check_branch
      %428 = sbr.rel (0) target = $region29
    $region28: #{tpu_custom_call.1} parent=1 // pred_region
      %429 = dma.done [#allocation3], 2048
    $region29: #{tpu_custom_call.1} parent=1 // pred_fallthru
      _
    %430 = vsyncpa [#allocation3], 1

// kernel: tpu_custom_call.1
$region0: #{tpu_custom_call.1}
  #allocation0 [shape = 'u32[]', space=smem, size = 0x4, offset = 0x4, fixed_abs, tag = 'smem constant byte address 0x4 - core index']
  #allocation1 [shape = 'u32[144,128]{1,0:T(1,128)}', space=vmem, size = 0x12000, scoped, tag = 'internal scratch']
  %s0 = inlined_call_operand.vmem [shape: f32[16,32], index: 0, kind: input, shape index: {}]
  %s1 = inlined_call_operand.vmem [shape: bf16[32,128], index: 1, kind: input, shape index: {}]
  %s2 = inlined_call_operand.vmem [shape: f32[1,128], index: 2, kind: input, shape index: {}]
  %s3 = inlined_call_operand.vmem [shape: bf16[128,32], index: 3, kind: input, shape index: {}]
  %s4 = inlined_call_operand.vmem [shape: f32[1,32], index: 4, kind: input, shape index: {}]
  %s5 = inlined_call_operand.hbm [shape: f32[16,32], index: 5, kind: output, shape index: {}]
  %s6 = sld [smem:[#allocation0]]
  $region30: #{tpu_custom_call.1} parent=0
    _
  %s8 = ssub.s32 1, %s6
  %s9 = scalar_select 0, %s8, %s6
  $region1: #{tpu_custom_call.1} parent=0
    #allocation2 [shape = 'u8[65536]{0}', space=vmem, size = 0x10000, scoped, tag = 'output window, operand 0, single buffered']
    #allocation3 [shape = 's32[1]{0}', space=sflag, size = 0x4, scoped, tag = 'scoped memory for tpu_custom_call.1']
    %10 = vsyncpa [#allocation3], 0
    // Predicated region
    $region2: #{tpu_custom_call.1} parent=1 // pred_check
      _
    $region3: #{tpu_custom_call.1} parent=1 // pred_check_branch
      %12 = sbr.rel (0) target = $region5
    $region4: #{tpu_custom_call.1} parent=1 // pred_region
      _
    $region5: #{tpu_custom_call.1} parent=1 // pred_fallthru
      _
    // Predicated region
    $region6: #{tpu_custom_call.1} parent=1 // pred_check
      _
    $region7: #{tpu_custom_call.1} parent=1 // pred_check_branch
      %14 = sbr.rel (0) target = $region9
    $region8: #{tpu_custom_call.1} parent=1 // pred_region
      _
    $region9: #{tpu_custom_call.1} parent=1 // pred_fallthru
      _
    // Predicated region
    $region10: #{tpu_custom_call.1} parent=1 // pred_check
      _
    $region11: #{tpu_custom_call.1} parent=1 // pred_check_branch
      %16 = sbr.rel (0) target = $region13
    $region12: #{tpu_custom_call.1} parent=1 // pred_region
      _
    $region13: #{tpu_custom_call.1} parent=1 // pred_fallthru
      _
    // Predicated region
    $region14: #{tpu_custom_call.1} parent=1 // pred_check
      _
    $region15: #{tpu_custom_call.1} parent=1 // pred_check_branch
      %18 = sbr.rel (0) target = $region17
    $region16: #{tpu_custom_call.1} parent=1 // pred_region
      _
    $region17: #{tpu_custom_call.1} parent=1 // pred_fallthru
      _
    // Predicated region
    $region18: #{tpu_custom_call.1} parent=1 // pred_check
      _
    $region19: #{tpu_custom_call.1} parent=1 // pred_check_branch
      %20 = sbr.rel (0) target = $region21
    $region20: #{tpu_custom_call.1} parent=1 // pred_region
      _
    $region21: #{tpu_custom_call.1} parent=1 // pred_fallthru
      _
    %v22 = vld [vmem:[%s0] sm:$0xff]
    %v23 = vld [vmem:[%s0 + $0x8] sm:$0xff]
    %v24 = vld [vmem:[%s0 + $0x10] sm:$0xff]
    %v25 = vld [vmem:[%s0 + $0x18] sm:$0xff]
    %v26 = vld [vmem:[%s0 + $0x20] sm:$0xff]
    %v27 = vld [vmem:[%s0 + $0x28] sm:$0xff]
    %v28 = vld [vmem:[%s0 + $0x30] sm:$0xff]
    %v29 = vld [vmem:[%s0 + $0x38] sm:$0xff]
    %v30 = vld [vmem:[%s0 + $0x40] sm:$0xff]
    %v31 = vld [vmem:[%s0 + $0x48] sm:$0xff]
    %v32 = vld [vmem:[%s0 + $0x50] sm:$0xff]
    %v33 = vld [vmem:[%s0 + $0x58] sm:$0xff]
    %v34 = vld [vmem:[%s0 + $0x60] sm:$0xff]
    %v35 = vld [vmem:[%s0 + $0x68] sm:$0xff]
    %v36 = vld [vmem:[%s0 + $0x70] sm:$0xff]
    %v37 = vld [vmem:[%s0 + $0x78] sm:$0xff]
    %v38 = vpack.c.bf16 %v23, %v22
    %v39 = vpack.c.bf16 %v25, %v24
    %v40 = vpack.c.bf16 %v27, %v26
    %v41 = vpack.c.bf16 %v29, %v28
    %v42 = vpack.c.bf16 %v31, %v30
    %v43 = vpack.c.bf16 %v33, %v32
    %v44 = vpack.c.bf16 %v35, %v34
    %v45 = vpack.c.bf16 %v37, %v36
    %v46 = vld [vmem:[%s1] sm:$0xf]
    %v47 = vld [vmem:[%s1 + $0x4] sm:$0xf]
    %v48 = vld [vmem:[%s1 + $0x8] sm:$0xf]
    %v49 = vld [vmem:[%s1 + $0xc] sm:$0xf]
    %v50 = vld [vmem:[%s2] sm:$0x1]
    %v52 = vlaneseq
    %v53 = vshrl.u32 %v52, 7
    %v54 = vsub.s32 0, %v53
    %v55 = vrot.slane %v50, %v54
    %v61 = vunpack.c.l.b16 %v46
    %v62 = vunpack.c.l.b16 %v47
    %v63 = vunpack.c.l.b16 %v48
    %v64 = vunpack.c.l.b16 %v49
    %v65 = vpack.c.b16 %v62, %v61
    %v66 = vpack.c.b16 %v64, %v63
    %vm69 = vcmask 261120
    %v71 = vsel %vm69, %v38, 0
    %v74 = vsel %vm69, %v39, 0
    %v77 = vsel %vm69, %v40, 0
    %v80 = vsel %vm69, %v41, 0
    %v83 = vsel %vm69, %v42, 0
    %v86 = vsel %vm69, %v43, 0
    %v89 = vsel %vm69, %v44, 0
    %v92 = vsel %vm69, %v45, 0
    %94 = vmatprep.subr.bf16.mxu0 0
    %95 = vmatpush1.bf16.msra.mxu0 %v65
    %96 = vmatprep.subr.bf16.mxu0 0
    %97 = vmatpush1.bf16.msra.mxu0 %v66
    %98 = vmatprep.subr.bf16.mxu0 0
    %99 = vmatpush1.bf16.msra.mxu0 0
    %100 = vmatprep.subr.bf16.mxu0 0
    %101 = vmatpush1.bf16.msra.mxu0 0
    %102 = vmatprep.subr.bf16.mxu0 0
    %103 = vmatpush1.bf16.msra.mxu0 0
    %104 = vmatprep.subr.bf16.mxu0 0
    %105 = vmatpush1.bf16.msra.mxu0 0
    %106 = vmatprep.subr.bf16.mxu0 0
    %107 = vmatpush1.bf16.msra.mxu0 0
    %108 = vmatprep.subr.bf16.mxu0 0
    %109 = vmatpush1.bf16.msra.mxu0 0
    %110 = vmatprep.subr.bf16.mxu0 0
    %111 = vmatpush1.bf16.msra.mxu0 0
    %112 = vmatprep.subr.bf16.mxu0 0
    %113 = vmatpush1.bf16.msra.mxu0 0
    %114 = vmatprep.subr.bf16.mxu0 0
    %115 = vmatpush1.bf16.msra.mxu0 0
    %116 = vmatprep.subr.bf16.mxu0 0
    %117 = vmatpush1.bf16.msra.mxu0 0
    %118 = vmatprep.subr.bf16.mxu0 0
    %119 = vmatpush1.bf16.msra.mxu0 0
    %120 = vmatprep.subr.bf16.mxu0 0
    %121 = vmatpush1.bf16.msra.mxu0 0
    %122 = vmatprep.subr.bf16.mxu0 0
    %123 = vmatpush1.bf16.msra.mxu0 0
    %124 = vmatprep.subr.bf16.mxu0 0
    %125 = vmatpush1.bf16.msra.mxu0 0
    %126 = vmatprep.mubr.bf16.mxu0 0
    %127 = vmatmul.mubr.bf16.gmra.mrb[0].mxu0 %v71
    %v128 = vpop.f32.mrb[0].mxu0
    %v129 = vadd.f32 %v55, %v128
    %v130 = vpop.f32.mrb[0].mxu0
    %v131 = vpop.f32.mrb[0].mxu0
    %v132 = vadd.f32 %v55, %v131
    %v133 = vpop.f32.mrb[0].mxu0
    %134 = vmatprep.mubr.bf16.mxu0 0
    %135 = vmatmul.mubr.bf16.gmra.mrb[0].mxu0 %v74
    %v136 = vpop.f32.mrb[0].mxu0
    %v137 = vadd.f32 %v55, %v136
    %v138 = vpop.f32.mrb[0].mxu0
    %v139 = vpop.f32.mrb[0].mxu0
    %v140 = vadd.f32 %v55, %v139
    %v141 = vpop.f32.mrb[0].mxu0
    %142 = vmatprep.mubr.bf16.mxu0 0
    %143 = vmatmul.mubr.bf16.gmra.mrb[0].mxu0 %v77
    %v144 = vpop.f32.mrb[0].mxu0
    %v145 = vadd.f32 %v55, %v144
    %v146 = vpop.f32.mrb[0].mxu0
    %v147 = vpop.f32.mrb[0].mxu0
    %v148 = vadd.f32 %v55, %v147
    %v149 = vpop.f32.mrb[0].mxu0
    %150 = vmatprep.mubr.bf16.mxu0 0
    %151 = vmatmul.mubr.bf16.gmra.mrb[0].mxu0 %v80
    %v152 = vpop.f32.mrb[0].mxu0
    %v153 = vadd.f32 %v55, %v152
    %v154 = vpop.f32.mrb[0].mxu0
    %v155 = vpop.f32.mrb[0].mxu0
    %v156 = vadd.f32 %v55, %v155
    %v157 = vpop.f32.mrb[0].mxu0
    %158 = vmatprep.mubr.bf16.mxu0 0
    %159 = vmatmul.mubr.bf16.gmra.mrb[0].mxu0 %v83
    %v160 = vpop.f32.mrb[0].mxu0
    %v161 = vadd.f32 %v55, %v160
    %v162 = vpop.f32.mrb[0].mxu0
    %v163 = vpop.f32.mrb[0].mxu0
    %v164 = vadd.f32 %v55, %v163
    %v165 = vpop.f32.mrb[0].mxu0
    %166 = vmatprep.mubr.bf16.mxu0 0
    %167 = vmatmul.mubr.bf16.gmra.mrb[0].mxu0 %v86
    %v168 = vpop.f32.mrb[0].mxu0
    %v169 = vadd.f32 %v55, %v168
    %v170 = vpop.f32.mrb[0].mxu0
    %v171 = vpop.f32.mrb[0].mxu0
    %v172 = vadd.f32 %v55, %v171
    %v173 = vpop.f32.mrb[0].mxu0
    %174 = vmatprep.mubr.bf16.mxu0 0
    %175 = vmatmul.mubr.bf16.gmra.mrb[0].mxu0 %v89
    %v176 = vpop.f32.mrb[0].mxu0
    %v177 = vadd.f32 %v55, %v176
    %v178 = vpop.f32.mrb[0].mxu0
    %v179 = vpop.f32.mrb[0].mxu0
    %v180 = vadd.f32 %v55, %v179
    %v181 = vpop.f32.mrb[0].mxu0
    %182 = vmatprep.mubr.bf16.mxu0 0
    %183 = vmatmul.mubr.bf16.gmra.mrb[0].mxu0 %v92
    %v184 = vpop.f32.mrb[0].mxu0
    %v185 = vadd.f32 %v55, %v184
    %v186 = vpop.f32.mrb[0].mxu0
    %v187 = vpop.f32.mrb[0].mxu0
    %v188 = vadd.f32 %v55, %v187
    %v189 = vpop.f32.mrb[0].mxu0
    %190 = vdwg.mxu0
    %v191 = vmax.f32 %v129, 0.0
    %v192 = vmax.f32 %v132, 0.0
    %v193 = vmax.f32 %v137, 0.0
    %v194 = vmax.f32 %v140, 0.0
    %v195 = vmax.f32 %v145, 0.0
    %v196 = vmax.f32 %v148, 0.0
    %v197 = vmax.f32 %v153, 0.0
    %v198 = vmax.f32 %v156, 0.0
    %v199 = vmax.f32 %v161, 0.0
    %v200 = vmax.f32 %v164, 0.0
    %v201 = vmax.f32 %v169, 0.0
    %v202 = vmax.f32 %v172, 0.0
    %v203 = vmax.f32 %v177, 0.0
    %v204 = vmax.f32 %v180, 0.0
    %v205 = vmax.f32 %v185, 0.0
    %v206 = vmax.f32 %v188, 0.0
    %v207 = vpack.c.bf16 %v192, %v191
    %v208 = vpack.c.bf16 %v194, %v193
    %v209 = vpack.c.bf16 %v196, %v195
    %v210 = vpack.c.bf16 %v198, %v197
    %v211 = vpack.c.bf16 %v200, %v199
    %v212 = vpack.c.bf16 %v202, %v201
    %v213 = vpack.c.bf16 %v204, %v203
    %v214 = vpack.c.bf16 %v206, %v205
    %v215 = vld [vmem:[%s3] sm:$0xf]
    %v216 = vld [vmem:[%s3 + $0x4] sm:$0xf]
    %v217 = vld [vmem:[%s3 + $0x8] sm:$0xf]
    %v218 = vld [vmem:[%s3 + $0xc] sm:$0xf]
    %v219 = vld [vmem:[%s3 + $0x10] sm:$0xf]
    %v220 = vld [vmem:[%s3 + $0x14] sm:$0xf]
    %v221 = vld [vmem:[%s3 + $0x18] sm:$0xf]
    %v222 = vld [vmem:[%s3 + $0x1c] sm:$0xf]
    %v223 = vld [vmem:[%s3 + $0x20] sm:$0xf]
    %v224 = vld [vmem:[%s3 + $0x24] sm:$0xf]
    %v225 = vld [vmem:[%s3 + $0x28] sm:$0xf]
    %v226 = vld [vmem:[%s3 + $0x2c] sm:$0xf]
    %v227 = vld [vmem:[%s3 + $0x30] sm:$0xf]
    %v228 = vld [vmem:[%s3 + $0x34] sm:$0xf]
    %v229 = vld [vmem:[%s3 + $0x38] sm:$0xf]
    %v230 = vld [vmem:[%s3 + $0x3c] sm:$0xf]
    %v231 = vld [vmem:[%s4] sm:$0x1]
    %v233 = vlaneseq
    %v234 = vshrl.u32 %v233, 7
    %v235 = vsub.s32 0, %v234
    %v236 = vrot.slane %v231, %v235
    %v254 = vunpack.c.l.b16 %v215
    %v255 = vunpack.c.l.b16 %v216
    %v256 = vunpack.c.l.b16 %v217
    %v257 = vunpack.c.l.b16 %v218
    %v258 = vunpack.c.l.b16 %v219
    %v259 = vunpack.c.l.b16 %v220
    %v260 = vunpack.c.l.b16 %v221
    %v261 = vunpack.c.l.b16 %v222
    %v262 = vunpack.c.l.b16 %v223
    %v263 = vunpack.c.l.b16 %v224
    %v264 = vunpack.c.l.b16 %v225
    %v265 = vunpack.c.l.b16 %v226
    %v266 = vunpack.c.l.b16 %v227
    %v267 = vunpack.c.l.b16 %v228
    %v268 = vunpack.c.l.b16 %v229
    %v269 = vunpack.c.l.b16 %v230
    %v270 = vpack.c.b16 %v255, %v254
    %v271 = vpack.c.b16 %v257, %v256
    %v272 = vpack.c.b16 %v259, %v258
    %v273 = vpack.c.b16 %v261, %v260
    %v274 = vpack.c.b16 %v263, %v262
    %v275 = vpack.c.b16 %v265, %v264
    %v276 = vpack.c.b16 %v267, %v266
    %v277 = vpack.c.b16 %v269, %v268
    %286 = vmatprep.subr.bf16.mxu0 0
    %287 = vmatpush1.bf16.msra.mxu0 %v270
    %288 = vmatprep.subr.bf16.mxu0 0
    %289 = vmatpush1.bf16.msra.mxu0 %v271
    %290 = vmatprep.subr.bf16.mxu0 0
    %291 = vmatpush1.bf16.msra.mxu0 %v272
    %292 = vmatprep.subr.bf16.mxu0 0
    %293 = vmatpush1.bf16.msra.mxu0 %v273
    %294 = vmatprep.subr.bf16.mxu0 0
    %295 = vmatpush1.bf16.msra.mxu0 %v274
    %296 = vmatprep.subr.bf16.mxu0 0
    %297 = vmatpush1.bf16.msra.mxu0 %v275
    %298 = vmatprep.subr.bf16.mxu0 0
    %299 = vmatpush1.bf16.msra.mxu0 %v276
    %300 = vmatprep.subr.bf16.mxu0 0
    %301 = vmatpush1.bf16.msra.mxu0 %v277
    %302 = vmatprep.subr.bf16.mxu0 0
    %303 = vmatpush1.bf16.msra.mxu0 0
    %304 = vmatprep.subr.bf16.mxu0 0
    %305 = vmatpush1.bf16.msra.mxu0 0
    %306 = vmatprep.subr.bf16.mxu0 0
    %307 = vmatpush1.bf16.msra.mxu0 0
    %308 = vmatprep.subr.bf16.mxu0 0
    %309 = vmatpush1.bf16.msra.mxu0 0
    %310 = vmatprep.subr.bf16.mxu0 0
    %311 = vmatpush1.bf16.msra.mxu0 0
    %312 = vmatprep.subr.bf16.mxu0 0
    %313 = vmatpush1.bf16.msra.mxu0 0
    %314 = vmatprep.subr.bf16.mxu0 0
    %315 = vmatpush1.bf16.msra.mxu0 0
    %316 = vmatprep.subr.bf16.mxu0 0
    %317 = vmatpush1.bf16.msra.mxu0 0
    %318 = vmatprep.mubr.bf16.mxu0 0
    %319 = vmatmul.mubr.bf16.gmra.mrb[0].mxu0 %v207
    %v320 = vpop.f32.mrb[0].mxu0
    %v321 = vadd.f32 %v236, %v320
    %v322 = vpop.f32.mrb[0].mxu0
    %v323 = vpop.f32.mrb[0].mxu0
    %v324 = vadd.f32 %v236, %v323
    %v325 = vpop.f32.mrb[0].mxu0
    %326 = vmatprep.mubr.bf16.mxu0 0
    %327 = vmatmul.mubr.bf16.gmra.mrb[0].mxu0 %v208
    %v328 = vpop.f32.mrb[0].mxu0
    %v329 = vadd.f32 %v236, %v328
    %v330 = vpop.f32.mrb[0].mxu0
    %v331 = vpop.f32.mrb[0].mxu0
    %v332 = vadd.f32 %v236, %v331
    %v333 = vpop.f32.mrb[0].mxu0
    %334 = vmatprep.mubr.bf16.mxu0 0
    %335 = vmatmul.mubr.bf16.gmra.mrb[0].mxu0 %v209
    %v336 = vpop.f32.mrb[0].mxu0
    %v337 = vadd.f32 %v236, %v336
    %v338 = vpop.f32.mrb[0].mxu0
    %v339 = vpop.f32.mrb[0].mxu0
    %v340 = vadd.f32 %v236, %v339
    %v341 = vpop.f32.mrb[0].mxu0
    %342 = vmatprep.mubr.bf16.mxu0 0
    %343 = vmatmul.mubr.bf16.gmra.mrb[0].mxu0 %v210
    %v344 = vpop.f32.mrb[0].mxu0
    %v345 = vadd.f32 %v236, %v344
    %v346 = vpop.f32.mrb[0].mxu0
    %v347 = vpop.f32.mrb[0].mxu0
    %v348 = vadd.f32 %v236, %v347
    %v349 = vpop.f32.mrb[0].mxu0
    %350 = vmatprep.mubr.bf16.mxu0 0
    %351 = vmatmul.mubr.bf16.gmra.mrb[0].mxu0 %v211
    %v352 = vpop.f32.mrb[0].mxu0
    %v353 = vadd.f32 %v236, %v352
    %v354 = vpop.f32.mrb[0].mxu0
    %v355 = vpop.f32.mrb[0].mxu0
    %v356 = vadd.f32 %v236, %v355
    %v357 = vpop.f32.mrb[0].mxu0
    %358 = vmatprep.mubr.bf16.mxu0 0
    %359 = vmatmul.mubr.bf16.gmra.mrb[0].mxu0 %v212
    %v360 = vpop.f32.mrb[0].mxu0
    %v361 = vadd.f32 %v236, %v360
    %v362 = vpop.f32.mrb[0].mxu0
    %v363 = vpop.f32.mrb[0].mxu0
    %v364 = vadd.f32 %v236, %v363
    %v365 = vpop.f32.mrb[0].mxu0
    %366 = vmatprep.mubr.bf16.mxu0 0
    %367 = vmatmul.mubr.bf16.gmra.mrb[0].mxu0 %v213
    %v368 = vpop.f32.mrb[0].mxu0
    %v369 = vadd.f32 %v236, %v368
    %v370 = vpop.f32.mrb[0].mxu0
    %v371 = vpop.f32.mrb[0].mxu0
    %v372 = vadd.f32 %v236, %v371
    %v373 = vpop.f32.mrb[0].mxu0
    %374 = vmatprep.mubr.bf16.mxu0 0
    %375 = vmatmul.mubr.bf16.gmra.mrb[0].mxu0 %v214
    %v376 = vpop.f32.mrb[0].mxu0
    %v377 = vadd.f32 %v236, %v376
    %v378 = vpop.f32.mrb[0].mxu0
    %v379 = vpop.f32.mrb[0].mxu0
    %v380 = vadd.f32 %v236, %v379
    %v381 = vpop.f32.mrb[0].mxu0
    %382 = vdwg.mxu0
    %v383 = vmax.f32 %v321, 0.0
    %v384 = vmax.f32 %v324, 0.0
    %v385 = vmax.f32 %v329, 0.0
    %v386 = vmax.f32 %v332, 0.0
    %v387 = vmax.f32 %v337, 0.0
    %v388 = vmax.f32 %v340, 0.0
    %v389 = vmax.f32 %v345, 0.0
    %v390 = vmax.f32 %v348, 0.0
    %v391 = vmax.f32 %v353, 0.0
    %v392 = vmax.f32 %v356, 0.0
    %v393 = vmax.f32 %v361, 0.0
    %v394 = vmax.f32 %v364, 0.0
    %v395 = vmax.f32 %v369, 0.0
    %v396 = vmax.f32 %v372, 0.0
    %v397 = vmax.f32 %v377, 0.0
    %v398 = vmax.f32 %v380, 0.0
    %399 = vst.msk [vmem:[#allocation2] sm:$0xff] %vm69, %v383
    %400 = vst.msk [vmem:[#allocation2 + $0x8] sm:$0xff] %vm69, %v384
    %401 = vst.msk [vmem:[#allocation2 + $0x10] sm:$0xff] %vm69, %v385
    %402 = vst.msk [vmem:[#allocation2 + $0x18] sm:$0xff] %vm69, %v386
    %403 = vst.msk [vmem:[#allocation2 + $0x20] sm:$0xff] %vm69, %v387
    %404 = vst.msk [vmem:[#allocation2 + $0x28] sm:$0xff] %vm69, %v388
    %405 = vst.msk [vmem:[#allocation2 + $0x30] sm:$0xff] %vm69, %v389
    %406 = vst.msk [vmem:[#allocation2 + $0x38] sm:$0xff] %vm69, %v390
    %407 = vst.msk [vmem:[#allocation2 + $0x40] sm:$0xff] %vm69, %v391
    %408 = vst.msk [vmem:[#allocation2 + $0x48] sm:$0xff] %vm69, %v392
    %409 = vst.msk [vmem:[#allocation2 + $0x50] sm:$0xff] %vm69, %v393
    %410 = vst.msk [vmem:[#allocation2 + $0x58] sm:$0xff] %vm69, %v394
    %411 = vst.msk [vmem:[#allocation2 + $0x60] sm:$0xff] %vm69, %v395
    %412 = vst.msk [vmem:[#allocation2 + $0x68] sm:$0xff] %vm69, %v396
    %413 = vst.msk [vmem:[#allocation2 + $0x70] sm:$0xff] %vm69, %v397
    %414 = vst.msk [vmem:[#allocation2 + $0x78] sm:$0xff] %vm69, %v398
    // Predicated region
    $region22: #{tpu_custom_call.1} parent=1 // pred_check
      _
    $region23: #{tpu_custom_call.1} parent=1 // pred_check_branch
      %416 = sbr.rel (0) target = $region25
    $region24: #{tpu_custom_call.1} parent=1 // pred_region
      %s418 = ssub.s32 2048, 256
      %419 = vsyncadd [#allocation3], %s418
      %s420 = sshll.u32 [#allocation2], 4
      %s421 = int_to_ptr.vmem [resolvable:$true] %s420
      %426 = dma.vmem_to_hbm [thread:$0]  %s421, 256, %s5, [#allocation3], 128, 128, 8
    $region25: #{tpu_custom_call.1} parent=1 // pred_fallthru
      _
    // Predicated region
    $region26: #{tpu_custom_call.1} parent=1 // pred_check
      _
    $region27: #{tpu_custom_call.1} parent=1 // pred_check_branch
      %428 = sbr.rel (0) target = $region29
    $region28: #{tpu_custom_call.1} parent=1 // pred_region
      %429 = dma.done [#allocation3], 2048
    $region29: #{tpu_custom_call.1} parent=1 // pred_fallthru
      _
    %430 = vsyncpa [#allocation3], 1

</llo_original>
